<compile_context>
chip_gen: v5e
topology: v5e:2x2
jax: 0.10.0
libtpu: 0.0.40
codegen_flags: <defaults>
</compile_context>

<pallas_src>
import math
import functools

import jax
import jax.numpy as jnp
from jax.experimental import pallas as pl
from jax.experimental.pallas import tpu as pltpu


_VMEM_LIMIT = 48 * 1024 * 1024          # scoped VMEM cap (safe on v5e/v6e/v7x)
_VMEM_BUDGET = 40 * 1024 * 1024         # tile-selection budget (headroom vs cap)
_MAX_ROW_TILE = 512                     # rows per grid step for linears / LN
_MAX_K_TILE = 2048                      # full-K tile => LN fusion, no acc loop
_ATTN_SCORE_BUDGET = 12 * 1024 * 1024   # f32 bytes for per-step attention scores


def _row_tile(m):
    # second-minor block dim must be a multiple of 8 or the full dim.
    if m <= _MAX_ROW_TILE:
        return m                         # full dim: always legal
    return _MAX_ROW_TILE                 # multiple of 8; cdiv grid + masked edge


def _k_tile(dim, max_tile):
    # contraction tiles must cover the array exactly (no OOB garbage in K).
    if dim <= max_tile:
        return dim
    best = None
    t = 128
    while t <= max_tile:
        if dim % t == 0:
            best = t
        t += 128
    return best if best is not None else dim


def _choose_tn(dout, fits):
    """Output-feature tile: prefer the full row (lane-dense stores, weights
    fetched once), else the largest 128-multiple divisor, else a 128-multiple
    with a masked cdiv boundary."""
    if fits(dout):
        return dout
    t = min(dout - 1, 2048) // 128 * 128
    while t >= 128:
        if dout % t == 0 and fits(t):
            return t
        t -= 128
    for t in (1024, 512, 256, 128):
        if t < dout and fits(t):
            return t
    return dout if dout <= 128 else 128


# ------------------------------- LayerNorm (fallback) ------------------------
# Only used when d_model is too large for a single K tile (no LN fusion).

def _layernorm_kernel(x_ref, g_ref, b_ref, o_ref, *, eps):
    x = x_ref[...].astype(jnp.float32)
    mean = jnp.mean(x, axis=-1, keepdims=True)
    var = jnp.mean(jnp.square(x - mean), axis=-1, keepdims=True)
    y = (x - mean) * jax.lax.rsqrt(var + eps)
    y = y * g_ref[...].astype(jnp.float32) + b_ref[...].astype(jnp.float32)
    o_ref[...] = y.astype(o_ref.dtype)


def layernorm(x2d, gamma, beta, *, eps=1e-5, out_dtype=None):
    M, D = x2d.shape
    out_dtype = out_dtype or x2d.dtype
    tm = _row_tile(M)
    return pl.pallas_call(
        functools.partial(_layernorm_kernel, eps=eps),
        grid=(pl.cdiv(M, tm),),
        in_specs=[
            pl.BlockSpec((tm, D), lambda i: (i, 0)),
            pl.BlockSpec((1, D), lambda i: (0, 0)),
            pl.BlockSpec((1, D), lambda i: (0, 0)),
        ],
        out_specs=pl.BlockSpec((tm, D), lambda i: (i, 0)),
        out_shape=jax.ShapeDtypeStruct((M, D), out_dtype),
        compiler_params=pltpu.CompilerParams(
            dimension_semantics=("parallel",),
            vmem_limit_bytes=_VMEM_LIMIT,
        ),
        cost_estimate=pl.CostEstimate(
            flops=8 * M * D, transcendentals=M,
            bytes_accessed=M * D * (x2d.dtype.itemsize
                                    + jnp.dtype(out_dtype).itemsize)),
    )(x2d, gamma.reshape(1, D), beta.reshape(1, D))


# --------------------- Tiled linear (fused LN / GELU / residual) -------------

def _linear_kernel(*refs, activation, fuse_residual, fuse_ln, ln_eps,
                   compute_dtype, single_k):
    it = iter(refs)
    x_ref = next(it)
    w_ref = next(it)
    b_ref = next(it)
    g_ref = next(it) if fuse_ln else None
    bb_ref = next(it) if fuse_ln else None
    r_ref = next(it) if fuse_residual else None
    o_ref = next(it)
    acc_ref = None if single_k else next(it)

    def operand():
        x = x_ref[...]
        if fuse_ln:
            # fp16-safe LayerNorm fused into the matmul prologue (f32 stats).
            xf = x.astype(jnp.float32)
            mean = jnp.mean(xf, axis=-1, keepdims=True)
            var = jnp.mean(jnp.square(xf - mean), axis=-1, keepdims=True)
            xf = (xf - mean) * jax.lax.rsqrt(var + ln_eps)
            xf = (xf * g_ref[...].astype(jnp.float32)
                  + bb_ref[...].astype(jnp.float32))
            x = xf.astype(compute_dtype)
        return x

    def epilogue(y):
        y = y + b_ref[...].astype(jnp.float32)
        if activation == "quick_gelu":
            y = y * jax.nn.sigmoid(1.702 * y)          # f32 QuickGELU
        if fuse_residual:
            y = y + r_ref[...].astype(jnp.float32)     # fused residual add
        o_ref[...] = y.astype(o_ref.dtype)

    if single_k:
        epilogue(jnp.dot(operand(), w_ref[...],
                         preferred_element_type=jnp.float32))
    else:
        k = pl.program_id(2)

        @pl.when(k == 0)
        def _():
            acc_ref[...] = jnp.zeros_like(acc_ref)

        acc_ref[...] += jnp.dot(operand(), w_ref[...],
                                preferred_element_type=jnp.float32)

        @pl.when(k == pl.num_programs(2) - 1)
        def _():
            epilogue(acc_ref[...])


def linear(x2d, w_t, b, *, residual=None, ln=None, activation=None,
           out_dtype=None, ln_eps=1e-5):
    """out = (LN?)(x2d) @ w_t + b  (+QuickGELU) (+residual).  w_t is (Din, Dout)."""
    M, Din = x2d.shape
    Dout = w_t.shape[1]
    out_dtype = out_dtype or x2d.dtype
    compute_dtype = w_t.dtype
    fuse_ln = ln is not None
    fuse_res = residual is not None

    bx = x2d.dtype.itemsize
    bw = w_t.dtype.itemsize
    bo = jnp.dtype(out_dtype).itemsize
    br = residual.dtype.itemsize if fuse_res else 0

    tm = _row_tile(M)
    tk = _k_tile(Din, _MAX_K_TILE)
    single_k = (tk == Din)
    if fuse_ln and not single_k:
        raise ValueError("LayerNorm fusion requires a full-K tile")

    def fits(tn):
        vmem = 2 * (tm * tk * bx + tk * tn * bw + tm * tn * br)   # dbl-buffered in
        vmem += 2 * tm * tn * bo                                  # dbl-buffered out
        vmem += 2 * tm * tn * 4                                   # f32 epilogue tmp
        if not single_k:
            vmem += tm * tn * 4                                   # f32 accumulator
        return vmem <= _VMEM_BUDGET

    tn = _choose_tn(Dout, fits)
    gm, gn, gk = pl.cdiv(M, tm), pl.cdiv(Dout, tn), Din // tk

    if single_k and gn == 1:
        # Best case: weight + bias fully resident, one lane-dense store per row
        # block, 1-D parallel grid over rows (megacore friendly).
        grid = (gm,)
        sem = ("parallel",)
        x_spec = pl.BlockSpec((tm, Din), lambda i: (i, 0))
        w_spec = pl.BlockSpec((Din, Dout), lambda i: (0, 0))
        b_spec = pl.BlockSpec((1, Dout), lambda i: (0, 0))
        ln_spec = pl.BlockSpec((1, Din), lambda i: (0, 0))
        r_spec = pl.BlockSpec((tm, Dout), lambda i: (i, 0))
        o_spec = pl.BlockSpec((tm, Dout), lambda i: (i, 0))
        scratch = []
    elif single_k:
        grid = (gm, gn)
        sem = ("parallel", "parallel")
        x_spec = pl.BlockSpec((tm, Din), lambda i, j: (i, 0))
        w_spec = pl.BlockSpec((Din, tn), lambda i, j: (0, j))
        b_spec = pl.BlockSpec((1, tn), lambda i, j: (0, j))
        ln_spec = pl.BlockSpec((1, Din), lambda i, j: (0, 0))
        r_spec = pl.BlockSpec((tm, tn), lambda i, j: (i, j))
        o_spec = pl.BlockSpec((tm, tn), lambda i, j: (i, j))
        scratch = []
    else:
        grid = (gm, gn, gk)
        sem = ("parallel", "parallel", "arbitrary")
        x_spec = pl.BlockSpec((tm, tk), lambda i, j, k: (i, k))
        w_spec = pl.BlockSpec((tk, tn), lambda i, j, k: (k, j))
        b_spec = pl.BlockSpec((1, tn), lambda i, j, k: (0, j))
        ln_spec = None
        r_spec = pl.BlockSpec((tm, tn), lambda i, j, k: (i, j))
        o_spec = pl.BlockSpec((tm, tn), lambda i, j, k: (i, j))
        scratch = [pltpu.VMEM((tm, tn), jnp.float32)]

    in_specs = [x_spec, w_spec, b_spec]
    args = [x2d, w_t, b.reshape(1, Dout)]
    if fuse_ln:
        gamma, beta = ln
        in_specs += [ln_spec, ln_spec]
        args += [gamma.reshape(1, Din), beta.reshape(1, Din)]
    if fuse_res:
        in_specs.append(r_spec)
        args.append(residual)

    flops = 2 * M * Din * Dout
    transcend = M * Dout if activation == "quick_gelu" else 0
    bytes_accessed = (M * Din * bx + Din * Dout * bw + Dout * 4
                      + M * Dout * bo + (M * Dout * br if fuse_res else 0))

    return pl.pallas_call(
        functools.partial(_linear_kernel, activation=activation,
                          fuse_residual=fuse_res, fuse_ln=fuse_ln,
                          ln_eps=ln_eps, compute_dtype=compute_dtype,
                          single_k=single_k),
        grid=grid,
        in_specs=in_specs,
        out_specs=o_spec,
        out_shape=jax.ShapeDtypeStruct((M, Dout), out_dtype),
        scratch_shapes=scratch,
        compiler_params=pltpu.CompilerParams(
            dimension_semantics=sem,
            vmem_limit_bytes=_VMEM_LIMIT,
        ),
        cost_estimate=pl.CostEstimate(flops=flops, transcendentals=transcend,
                                      bytes_accessed=bytes_accessed),
    )(*args)


# ------------------------------- Attention -----------------------------------

def _attn_kernel(*refs, n_head, head_dim, scale, has_mask, head_group,
                 approx_recip):
    if has_mask:
        qkv_ref, m_ref, o_ref = refs
        mask = m_ref[...].astype(jnp.float32)
    else:
        qkv_ref, o_ref = refs
        mask = None

    D = n_head * head_dim
    x = qkv_ref[...]                                   # (L, 3D) compute dtype
    L = x.shape[0]
    # head-major (H, L, hd) so the einsums are plain leading-batch matmuls
    q = jnp.swapaxes(x[:, :D].reshape(L, n_head, head_dim), 0, 1)
    k = jnp.swapaxes(x[:, D:2 * D].reshape(L, n_head, head_dim), 0, 1)
    v = jnp.swapaxes(x[:, 2 * D:].reshape(L, n_head, head_dim), 0, 1)

    outs = []
    for g in range(n_head // head_group):              # usually 1 group
        h0 = g * head_group
        qg = q[h0:h0 + head_group]
        kg = k[h0:h0 + head_group]
        vg = v[h0:h0 + head_group]
        s = jnp.einsum("hqd,hkd->hqk", qg, kg,
                       preferred_element_type=jnp.float32) * scale
        if has_mask:
            s = s + mask[None]
        s = s - jnp.max(s, axis=-1, keepdims=True)
        p = jnp.exp(s)
        p = p * pl.reciprocal(jnp.sum(p, axis=-1, keepdims=True),
                              approx=approx_recip)
        outs.append(jnp.einsum("hqk,hkd->hqd", p.astype(vg.dtype), vg,
                               preferred_element_type=jnp.float32))
    o = outs[0] if len(outs) == 1 else jnp.concatenate(outs, axis=0)
    # single lane-dense (L, D) store
    o_ref[...] = jnp.swapaxes(o, 0, 1).reshape(L, D).astype(o_ref.dtype)


def attention(qkv3d, attn_mask, *, n_head, scale, out_dtype, approx_recip):
    """qkv3d: (N, L, 3D) batch-major slab from the in_proj linear.
    Returns the attention context as a (N, L, D) slab (lane-dense stores)."""
    N, L, threeD = qkv3d.shape
    D = threeD // 3
    hd = D // n_head
    has_mask = attn_mask is not None

    # Process heads in groups whose f32 score tensors fit the VMEM budget
    # (keeps the per-step working set v7x-safe at large L).
    head_group = n_head
    while head_group > 1 and 2 * head_group * L * L * 4 > _ATTN_SCORE_BUDGET:
        head_group -= 1
        while n_head % head_group:
            head_group -= 1

    in_specs = [pl.BlockSpec((None, L, threeD), lambda n: (n, 0, 0))]
    args = [qkv3d]
    if has_mask:
        in_specs.append(pl.BlockSpec((L, L), lambda n: (0, 0)))
        args.append(attn_mask.astype(jnp.float32))

    flops = 4 * N * n_head * L * L * hd
    bytes_accessed = (qkv3d.size * qkv3d.dtype.itemsize
                      + N * L * D * jnp.dtype(out_dtype).itemsize
                      + (attn_mask.size * 4 if has_mask else 0))

    return pl.pallas_call(
        functools.partial(_attn_kernel, n_head=n_head, head_dim=hd, scale=scale,
                          has_mask=has_mask, head_group=head_group,
                          approx_recip=approx_recip),
        grid=(N,),
        in_specs=in_specs,
        out_specs=pl.BlockSpec((None, L, D), lambda n: (n, 0, 0)),
        out_shape=jax.ShapeDtypeStruct((N, L, D), out_dtype),
        compiler_params=pltpu.CompilerParams(
            dimension_semantics=("parallel",),
            vmem_limit_bytes=_VMEM_LIMIT,
        ),
        cost_estimate=pl.CostEstimate(flops=flops,
                                      transcendentals=N * n_head * L * L,
                                      bytes_accessed=bytes_accessed),
    )(*args)


# ------------------------------ Block forward --------------------------------

def residual_attention_block(x, params, attn_mask=None, *, compute_dtype=None):
    """x: (L, N, D) seq-first (torch MultiheadAttention layout).  Returns (L, N, D).
    Residual stream stays in x.dtype; matmul operands run in `compute_dtype`."""
    L, N, D = x.shape
    H = params["n_head"]
    assert D % H == 0
    hd = D // H
    res_dtype = x.dtype
    cdt = compute_dtype or res_dtype
    approx_recip = jnp.dtype(cdt) != jnp.dtype(jnp.float32)

    def cw(w):  # cast weights to the matmul operand dtype
        return w.astype(cdt)

    # Internal layout is batch-major (N, L, D): the attention kernel then reads
    # one whole (L, 3D) slab per batch element with fully dense blocks and
    # writes one lane-dense (L, D) slab.  Row-wise linears/LN are layout
    # agnostic, so only these two transposes are needed per block.
    x2d = jnp.transpose(x, (1, 0, 2)).reshape(N * L, D)

    can_fuse_ln = _k_tile(D, _MAX_K_TILE) == D

    # --- x = x + out_proj(attn(ln_1(x))) ---
    if can_fuse_ln:
        qkv = linear(x2d, cw(params["in_proj_w_t"]), params["in_proj_b"],
                     ln=(params["ln1_g"], params["ln1_b"]), out_dtype=cdt)
    else:
        h = layernorm(x2d, params["ln1_g"], params["ln1_b"], out_dtype=cdt)
        qkv = linear(h, cw(params["in_proj_w_t"]), params["in_proj_b"],
                     out_dtype=cdt)
    ctx = attention(qkv.reshape(N, L, 3 * D), attn_mask,
                    n_head=H, scale=1.0 / math.sqrt(hd), out_dtype=cdt,
                    approx_recip=approx_recip)
    x2d = linear(ctx.reshape(N * L, D), cw(params["out_proj_w_t"]),
                 params["out_proj_b"], residual=x2d, out_dtype=res_dtype)

    # --- x = x + c_proj(QuickGELU(c_fc(ln_2(x)))) ---
    if can_fuse_ln:
        h2 = linear(x2d, cw(params["fc_w_t"]), params["fc_b"],
                    ln=(params["ln2_g"], params["ln2_b"]),
                    activation="quick_gelu", out_dtype=cdt)
    else:
        h2 = layernorm(x2d, params["ln2_g"], params["ln2_b"], out_dtype=cdt)
        h2 = linear(h2, cw(params["fc_w_t"]), params["fc_b"],
                    activation="quick_gelu", out_dtype=cdt)
    x2d = linear(h2, cw(params["proj_w_t"]), params["proj_b"],
                 residual=x2d, out_dtype=res_dtype)

    return jnp.transpose(x2d.reshape(N, L, D), (1, 0, 2))


# ------------------------------ params / reference ---------------------------

def init_params(key, d_model, n_head):
    ks = jax.random.split(key, 8)
    s = 0.02
    f32 = jnp.float32
    return {
        "n_head": n_head,
        "ln1_g": jnp.ones((d_model,), f32),
        "ln1_b": jnp.zeros((d_model,), f32),
        "ln2_g": jnp.ones((d_model,), f32),
        "ln2_b": jnp.zeros((d_model,), f32),
        # torch in_proj_weight is (3D, D); we store the transpose (D, 3D).
        "in_proj_w_t": s * jax.random.normal(ks[0], (d_model, 3 * d_model), f32),
        "in_proj_b":   s * jax.random.normal(ks[1], (3 * d_model,), f32),
        "out_proj_w_t": s * jax.random.normal(ks[2], (d_model, d_model), f32),
        "out_proj_b":   s * jax.random.normal(ks[3], (d_model,), f32),
        "fc_w_t":   s * jax.random.normal(ks[4], (d_model, 4 * d_model), f32),
        "fc_b":     s * jax.random.normal(ks[5], (4 * d_model,), f32),
        "proj_w_t": s * jax.random.normal(ks[6], (4 * d_model, d_model), f32),
        "proj_b":   s * jax.random.normal(ks[7], (d_model,), f32),
    }


def reference_forward(x, p, attn_mask=None):
    L, N, D = x.shape
    H = p["n_head"]
    hd = D // H

    def ln(y, g, b):
        y = y.astype(jnp.float32)
        m = y.mean(-1, keepdims=True)
        v = jnp.square(y - m).mean(-1, keepdims=True)
        return (y - m) / jnp.sqrt(v + 1e-5) * g + b

    h = ln(x, p["ln1_g"], p["ln1_b"]).reshape(L * N, D)
    qkv = h @ p["in_proj_w_t"] + p["in_proj_b"]
    qkv = qkv.reshape(L, N, 3, H, hd)
    qkv = jnp.transpose(qkv, (2, 1, 3, 0, 4)).reshape(3, N * H, L, hd)
    q, k, v = qkv[0], qkv[1], qkv[2]
    s = jnp.einsum("bqd,bkd->bqk", q, k) / math.sqrt(hd)
    if attn_mask is not None:
        s = s + attn_mask
    a = jax.nn.softmax(s, axis=-1)
    o = jnp.einsum("bqk,bkd->bqd", a, v)
    o = o.reshape(N, H, L, hd).transpose(2, 0, 1, 3).reshape(L * N, D)
    o = o @ p["out_proj_w_t"] + p["out_proj_b"]
    x = x + o.reshape(L, N, D)
    h2 = ln(x, p["ln2_g"], p["ln2_b"]).reshape(L * N, D)
    h2 = h2 @ p["fc_w_t"] + p["fc_b"]
    h2 = h2 * jax.nn.sigmoid(1.702 * h2)
    h2 = h2 @ p["proj_w_t"] + p["proj_b"]
    return x + h2.reshape(L, N, D)


# ---------------------------------- main --------------------------------------

if __name__ == "__main__":
    key = jax.random.PRNGKey(0)
    kx, kp, kx2 = jax.random.split(key, 3)

    # Small config consistent with the module: seq=8, batch=2, d_model=32, heads=4.
    L, N, D, H = 8, 2, 32, 4
    x = jax.random.normal(kx, (L, N, D), jnp.float32)
    params = init_params(kp, D, H)
    ref = reference_forward(x, params, attn_mask=None)

    # 1) exact-arithmetic check (f32 operands, exact reciprocal)
    out_f32 = jax.block_until_ready(
        residual_attention_block(x, params, attn_mask=None,
                                 compute_dtype=jnp.float32))
    assert out_f32.shape == (L, N, D)
    assert jnp.allclose(out_f32, ref, atol=1e-4, rtol=1e-4), "f32 mismatch"

    # 2) masked path (causal additive mask), f32
    causal = jnp.triu(jnp.full((L, L), -1e9, jnp.float32), k=1)
    out_m = jax.block_until_ready(
        residual_attention_block(x, params, attn_mask=causal,
                                 compute_dtype=jnp.float32))
    ref_m = reference_forward(x, params, attn_mask=causal)
    assert jnp.allclose(out_m, ref_m, atol=1e-4, rtol=1e-4), "masked mismatch"

    # 3) production config: bf16 matmul operands, f32 accumulation/epilogues
    out_bf16 = jax.block_until_ready(
        residual_attention_block(x, params, attn_mask=None,
                                 compute_dtype=jnp.bfloat16))
    assert jnp.allclose(out_bf16, ref, atol=5e-2, rtol=5e-2), "bf16 mismatch"

    # 4) non-divisible shape (prime-ish seq length -> cdiv grids, masked boundary)
    L2, N2 = 173, 3                       # M = 519 rows > 512-row tile
    x2 = jax.random.normal(kx2, (L2, N2, D), jnp.float32)
    ref2 = reference_forward(x2, params, attn_mask=None)
    out2 = jax.block_until_ready(
        residual_attention_block(x2, params, attn_mask=None,
                                 compute_dtype=jnp.float32))
    assert jnp.allclose(out2, ref2, atol=1e-4, rtol=1e-4), "cdiv-shape mismatch"

    print("KERNEL_OK")
</pallas_src>

<mosaic_0001>
module attributes {stable_mosaic.version = 11 : i64} {
  func.func @_linear_kernel(%arg0: i32, %arg1: memref<16x32xf32, #tpu.memory_space<vmem>>, %arg2: memref<32x96xf32, #tpu.memory_space<vmem>>, %arg3: memref<1x96xf32, #tpu.memory_space<vmem>>, %arg4: memref<1x32xf32, #tpu.memory_space<vmem>>, %arg5: memref<1x32xf32, #tpu.memory_space<vmem>>, %arg6: memref<16x96xf32, #tpu.memory_space<vmem>>) attributes {dimension_semantics = [#tpu.dimension_semantics<parallel>], iteration_bounds = array<i64: 1>, scalar_prefetch = 0 : i64, scratch_operands = 0 : i64, tpu.core_type = #tpu.core_type<tc>, window_params = [{transform_indices = @transform_0, window_bounds = array<i64: 16, 32>}, {pipeline_mode = #tpu.pipeline_mode<synchronous>, transform_indices = @transform_1, window_bounds = array<i64: 32, 96>}, {pipeline_mode = #tpu.pipeline_mode<synchronous>, transform_indices = @transform_2, window_bounds = array<i64: 1, 96>}, {pipeline_mode = #tpu.pipeline_mode<synchronous>, transform_indices = @transform_3, window_bounds = array<i64: 1, 32>}, {pipeline_mode = #tpu.pipeline_mode<synchronous>, transform_indices = @transform_4, window_bounds = array<i64: 1, 32>}, {transform_indices = @transform_5, window_bounds = array<i64: 16, 96>}]} {
    %c0 = arith.constant 0 : index
    %c0_0 = arith.constant 0 : index
    %0 = vector.load %arg1[%c0, %c0_0] : memref<16x32xf32, #tpu.memory_space<vmem>>, vector<16x32xf32>
    %cst = arith.constant dense<0.000000e+00> : vector<16xf32>
    %1 = vector.multi_reduction <add>, %0, %cst [1] : vector<16x32xf32> to vector<16xf32>
    %2 = vector.shape_cast %1 : vector<16xf32> to vector<16x1xf32>
    %cst_1 = arith.constant 3.200000e+01 : f32
    %3 = vector.broadcast %cst_1 : f32 to vector<16x1xf32>
    %4 = arith.divf %2, %3 : vector<16x1xf32>
    %5 = vector.broadcast %4 : vector<16x1xf32> to vector<16x32xf32>
    %6 = arith.subf %0, %5 : vector<16x32xf32>
    %7 = arith.mulf %6, %6 : vector<16x32xf32>
    %cst_2 = arith.constant dense<0.000000e+00> : vector<16xf32>
    %8 = vector.multi_reduction <add>, %7, %cst_2 [1] : vector<16x32xf32> to vector<16xf32>
    %9 = vector.shape_cast %8 : vector<16xf32> to vector<16x1xf32>
    %cst_3 = arith.constant 3.200000e+01 : f32
    %10 = vector.broadcast %cst_3 : f32 to vector<16x1xf32>
    %11 = arith.divf %9, %10 : vector<16x1xf32>
    %12 = vector.broadcast %4 : vector<16x1xf32> to vector<16x32xf32>
    %13 = arith.subf %0, %12 : vector<16x32xf32>
    %cst_4 = arith.constant 9.99999974E-6 : f32
    %14 = vector.broadcast %cst_4 : f32 to vector<16x1xf32>
    %15 = arith.addf %11, %14 : vector<16x1xf32>
    %16 = math.rsqrt %15 : vector<16x1xf32>
    %17 = vector.broadcast %16 : vector<16x1xf32> to vector<16x32xf32>
    %18 = arith.mulf %13, %17 : vector<16x32xf32>
    %c0_5 = arith.constant 0 : index
    %c0_6 = arith.constant 0 : index
    %19 = vector.load %arg4[%c0_5, %c0_6] : memref<1x32xf32, #tpu.memory_space<vmem>>, vector<1x32xf32>
    %20 = vector.broadcast %19 : vector<1x32xf32> to vector<16x32xf32>
    %21 = arith.mulf %18, %20 : vector<16x32xf32>
    %c0_7 = arith.constant 0 : index
    %c0_8 = arith.constant 0 : index
    %22 = vector.load %arg5[%c0_7, %c0_8] : memref<1x32xf32, #tpu.memory_space<vmem>>, vector<1x32xf32>
    %23 = vector.broadcast %22 : vector<1x32xf32> to vector<16x32xf32>
    %24 = arith.addf %21, %23 : vector<16x32xf32>
    %c0_9 = arith.constant 0 : index
    %c0_10 = arith.constant 0 : index
    %25 = vector.load %arg2[%c0_9, %c0_10] : memref<32x96xf32, #tpu.memory_space<vmem>>, vector<32x96xf32>
    %cst_11 = arith.constant dense<0.000000e+00> : vector<16x96xf32>
    %26 = tpu.matmul %24, %25, %cst_11 {dimension_numbers = #tpu.dot_dimension_numbers<[1], [0], [0], [1], [0, 0, 1, 1], [], []>} : vector<16x32xf32>, vector<32x96xf32>, vector<16x96xf32> -> vector<16x96xf32>
    %c0_12 = arith.constant 0 : index
    %c0_13 = arith.constant 0 : index
    %27 = vector.load %arg3[%c0_12, %c0_13] : memref<1x96xf32, #tpu.memory_space<vmem>>, vector<1x96xf32>
    %28 = vector.broadcast %27 : vector<1x96xf32> to vector<16x96xf32>
    %29 = arith.addf %26, %28 : vector<16x96xf32>
    %c0_14 = arith.constant 0 : index
    %c0_15 = arith.constant 0 : index
    %30 = vector.load %arg6[%c0_14, %c0_15] : memref<16x96xf32, #tpu.memory_space<vmem>>, vector<16x96xf32>
    tpu.vector_store %arg6[%c0_14, %c0_15], %29 {strides = array<i32>} : memref<16x96xf32, #tpu.memory_space<vmem>>, vector<16x96xf32>,
    return
  }
  func.func @transform_0(%arg0: i32) -> (i32, i32) {
    %c0_i32 = arith.constant 0 : i32
    %c0_i32_0 = arith.constant 0 : i32
    return %arg0, %c0_i32 : i32, i32
  }
  func.func @transform_1(%arg0: i32) -> (i32, i32) {
    %c0_i32 = arith.constant 0 : i32
    %c0_i32_0 = arith.constant 0 : i32
    %c0_i32_1 = arith.constant 0 : i32
    return %c0_i32, %c0_i32_0 : i32, i32
  }
  func.func @transform_2(%arg0: i32) -> (i32, i32) {
    %c0_i32 = arith.constant 0 : i32
    %c0_i32_0 = arith.constant 0 : i32
    %c0_i32_1 = arith.constant 0 : i32
    return %c0_i32, %c0_i32_0 : i32, i32
  }
  func.func @transform_3(%arg0: i32) -> (i32, i32) {
    %c0_i32 = arith.constant 0 : i32
    %c0_i32_0 = arith.constant 0 : i32
    %c0_i32_1 = arith.constant 0 : i32
    return %c0_i32, %c0_i32_0 : i32, i32
  }
  func.func @transform_4(%arg0: i32) -> (i32, i32) {
    %c0_i32 = arith.constant 0 : i32
    %c0_i32_0 = arith.constant 0 : i32
    %c0_i32_1 = arith.constant 0 : i32
    return %c0_i32, %c0_i32_0 : i32, i32
  }
  func.func @transform_5(%arg0: i32) -> (i32, i32) {
    %c0_i32 = arith.constant 0 : i32
    %c0_i32_0 = arith.constant 0 : i32
    return %arg0, %c0_i32 : i32, i32
  }
}

</mosaic_0001>

<llo_original>
// kernel: tpu_custom_call.1
$region0: #{tpu_custom_call.1}
  #allocation0 [shape = 'u32[]', space=smem, size = 0x4, offset = 0x4, fixed_abs, tag = 'smem constant byte address 0x4 - core index']
  #allocation1 [shape = 'u32[72,128]{1,0:T(1,128)}', space=vmem, size = 0x9000, scoped, tag = 'internal scratch']
  %s0 = inlined_call_operand.hbm [shape: f32[16,32], index: 0, kind: input, shape index: {}]
  %s1 = inlined_call_operand.hbm [shape: f32[32,96], index: 1, kind: input, shape index: {}]
  %s2 = inlined_call_operand.vmem [shape: f32[1,96], index: 2, kind: input, shape index: {}]
  %s3 = inlined_call_operand.vmem [shape: f32[1,32], index: 3, kind: input, shape index: {}]
  %s4 = inlined_call_operand.vmem [shape: f32[1,32], index: 4, kind: input, shape index: {}]
  %s5 = inlined_call_operand.hbm [shape: f32[16,96], index: 5, kind: output, shape index: {}]
  %s6 = sld [smem:[#allocation0]]
  $region38: #{tpu_custom_call.1} parent=0
    _
  %s8 = ssub.s32 1, %s6
  %s9 = scalar_select 0, %s8, %s6
  $region1: #{tpu_custom_call.1} parent=0
    #allocation2 [shape = 'u8[8192]{0}', space=vmem, size = 0x2000, scoped, tag = 'input window, operand 0, single buffered']
    #allocation3 [shape = 's32[1]{0}', space=sflag, size = 0x4, scoped, tag = 'scoped memory for tpu_custom_call.1']
    #allocation4 [shape = 's32[1]{0}', space=sflag, size = 0x4, scoped, tag = 'scoped memory for tpu_custom_call.1']
    #allocation5 [shape = 'u8[16384]{0}', space=vmem, size = 0x4000, scoped, tag = 'input window, operand 1, single buffered']
    #allocation6 [shape = 's32[1]{0}', space=sflag, size = 0x4, scoped, tag = 'scoped memory for tpu_custom_call.1']
    #allocation7 [shape = 'u8[8192]{0}', space=vmem, size = 0x2000, scoped, tag = 'output window, operand 0, single buffered']
    %10 = vsyncpa [#allocation3], 0
    %11 = vsyncpa [#allocation6], 0
    %12 = vsyncpa [#allocation4], 0
    // Predicated region
    $region2: #{tpu_custom_call.1} parent=1 // pred_check
      _
    $region3: #{tpu_custom_call.1} parent=1 // pred_check_branch
      %14 = sbr.rel (0) target = $region5
    $region4: #{tpu_custom_call.1} parent=1 // pred_region
      %16 = vsyncadd [#allocation3], 0
      %s17 = sshll.u32 %s0, 4
      %s18 = int_to_ptr.hbm [resolvable:$true] %s17
      %s19 = sshll.u32 [#allocation2], 4
      %s20 = int_to_ptr.vmem [resolvable:$true] %s19
      %25 = dma.hbm_to_vmem [thread:$0]  %s18, 256, %s20, [#allocation3], 128, 128, 8
    $region5: #{tpu_custom_call.1} parent=1 // pred_fallthru
      _
    // Predicated region
    $region6: #{tpu_custom_call.1} parent=1 // pred_check
      _
    $region7: #{tpu_custom_call.1} parent=1 // pred_check_branch
      %27 = sbr.rel (0) target = $region9
    $region8: #{tpu_custom_call.1} parent=1 // pred_region
      %29 = vsyncadd [#allocation6], 0
      %s30 = sshll.u32 %s1, 4
      %s31 = int_to_ptr.hbm [resolvable:$true] %s30
      %s32 = sshll.u32 [#allocation5], 4
      %s33 = int_to_ptr.vmem [resolvable:$true] %s32
      %38 = dma.hbm_to_vmem [thread:$0]  %s31, 512, %s33, [#allocation6], 128, 128, 8
    $region9: #{tpu_custom_call.1} parent=1 // pred_fallthru
      _
    // Predicated region
    $region10: #{tpu_custom_call.1} parent=1 // pred_check
      _
    $region11: #{tpu_custom_call.1} parent=1 // pred_check_branch
      %40 = sbr.rel (0) target = $region13
    $region12: #{tpu_custom_call.1} parent=1 // pred_region
      _
    $region13: #{tpu_custom_call.1} parent=1 // pred_fallthru
      _
    // Predicated region
    $region14: #{tpu_custom_call.1} parent=1 // pred_check
      _
    $region15: #{tpu_custom_call.1} parent=1 // pred_check_branch
      %42 = sbr.rel (0) target = $region17
    $region16: #{tpu_custom_call.1} parent=1 // pred_region
      _
    $region17: #{tpu_custom_call.1} parent=1 // pred_fallthru
      _
    // Predicated region
    $region18: #{tpu_custom_call.1} parent=1 // pred_check
      _
    $region19: #{tpu_custom_call.1} parent=1 // pred_check_branch
      %44 = sbr.rel (0) target = $region21
    $region20: #{tpu_custom_call.1} parent=1 // pred_region
      _
    $region21: #{tpu_custom_call.1} parent=1 // pred_fallthru
      _
    // Predicated region
    $region22: #{tpu_custom_call.1} parent=1 // pred_check
      _
    $region23: #{tpu_custom_call.1} parent=1 // pred_check_branch
      %46 = sbr.rel (0) target = $region25
    $region24: #{tpu_custom_call.1} parent=1 // pred_region
      %48 = dma.done [#allocation3], 256
    $region25: #{tpu_custom_call.1} parent=1 // pred_fallthru
      _
    // Predicated region
    $region26: #{tpu_custom_call.1} parent=1 // pred_check
      _
    $region27: #{tpu_custom_call.1} parent=1 // pred_check_branch
      %50 = sbr.rel (0) target = $region29
    $region28: #{tpu_custom_call.1} parent=1 // pred_region
      %52 = dma.done [#allocation6], 512
    $region29: #{tpu_custom_call.1} parent=1 // pred_fallthru
      _
    %v53 = vld [vmem:[#allocation2] sm:$0xff]
    %v54 = vld [vmem:[#allocation2 + $0x8] sm:$0xff]
    %vm55 = vcmask 261120
    %v56 = vsel %vm55, %v53, 0.0
    %57 = vadd.xlane.f32.xlu0 %v56
    %v58 = vpop.xlane.xlu0 %57
    %v59 = vsel %vm55, %v54, 0.0
    %60 = vadd.xlane.f32.xlu0 %v59
    %v61 = vpop.xlane.xlu0 %60
    %v62 = vrcp.pop 32.0
    %v63 = vmul.f32 32.0, %v62
    %v64 = vsub.f32 1.0, %v63
    %v65 = vmul.f32 %v62, %v64
    %v66 = vadd.f32 %v62, %v65
    %vm67 = vweird.f32 %v62
    %v68 = vsel %vm67, %v62, %v66
    %v69 = vmul.f32 %v58, %v68
    %v70 = vmul.f32 %v61, %v68
    %v71 = vsub.f32 %v53, %v69
    %v72 = vsub.f32 %v54, %v70
    %v73 = vmul.f32 %v71, %v71
    %v74 = vmul.f32 %v72, %v72
    %v75 = vsel %vm55, %v73, 0.0
    %76 = vadd.xlane.f32.xlu0 %v75
    %v77 = vpop.xlane.xlu0 %76
    %v78 = vsel %vm55, %v74, 0.0
    %79 = vadd.xlane.f32.xlu0 %v78
    %v80 = vpop.xlane.xlu0 %79
    %v81 = vmul.f32 %v77, %v68
    %v82 = vmul.f32 %v80, %v68
    %v83 = vadd.f32 %v81, 1e-05
    %v84 = vadd.f32 %v82, 1e-05
    %v85 = vrsqrt.pop %v83
    %v86 = vmul.f32 %v85, %v83
    %v87 = vmul.f32 %v86, %v85
    %v88 = vmul.f32 0.5, %v87
    %v89 = vsub.f32 1.5, %v88
    %v90 = vmul.f32 %v85, %v89
    %vm91 = vweird.f32 %v83
    %vm92 = vweird.f32 %v85
    %vm93 = vmor %vm91, %vm92
    %v94 = vsel %vm93, %v85, %v90
    %v95 = vrsqrt.pop %v84
    %v96 = vmul.f32 %v95, %v84
    %v97 = vmul.f32 %v96, %v95
    %v98 = vmul.f32 0.5, %v97
    %v99 = vsub.f32 1.5, %v98
    %v100 = vmul.f32 %v95, %v99
    %vm101 = vweird.f32 %v84
    %vm102 = vweird.f32 %v95
    %vm103 = vmor %vm101, %vm102
    %v104 = vsel %vm103, %v95, %v100
    %v105 = vmul.f32 %v71, %v94
    %v106 = vmul.f32 %v72, %v104
    %v107 = vld [vmem:[%s3] sm:$0x1]
    %v109 = vperm.slane %v107, 0
    %v111 = vmul.f32 %v105, %v109
    %v112 = vmul.f32 %v106, %v109
    %v113 = vld [vmem:[%s4] sm:$0x1]
    %v115 = vperm.slane %v113, 0
    %v117 = vadd.f32 %v111, %v115
    %v118 = vadd.f32 %v112, %v115
    %v119 = vld [vmem:[#allocation5] sm:$0xff]
    %v120 = vld [vmem:[#allocation5 + $0x8] sm:$0xff]
    %v121 = vld [vmem:[#allocation5 + $0x10] sm:$0xff]
    %v122 = vld [vmem:[#allocation5 + $0x18] sm:$0xff]
    %v123 = vld [vmem:[%s2] sm:$0x1]
    %v125 = vperm.slane %v123, 0
    %v128 = vsel %vm55, %v117, 0
    %v131 = vsel %vm55, %v118, 0
    %133 = vmatpush.msra.mxu0 0.0
    %134 = vmatpush.msra.mxu0 0.0
    %135 = vmatpush.msra.mxu0 0.0
    %136 = vmatpush.msra.mxu0 0.0
    %137 = vmatpush.msra.mxu0 0.0
    %138 = vmatpush.msra.mxu0 0.0
    %139 = vmatpush.msra.mxu0 0.0
    %140 = vmatpush.msra.mxu0 0.0
    %141 = vmatpush.msra.mxu0 0.0
    %142 = vmatpush.msra.mxu0 0.0
    %143 = vmatpush.msra.mxu0 0.0
    %144 = vmatpush.msra.mxu0 0.0
    %145 = vmatpush.msra.mxu0 %v122
    %146 = vmatpush.msra.mxu0 %v121
    %147 = vmatpush.msra.mxu0 %v120
    %148 = vmatpush.msra.mxu0 %v119
    %149 = vmatmul.f32.gmra.mxu0 %v128
    %v150 = vpop.f32.mrf.mxu0
    %v151 = vadd.f32 %v125, %v150
    %152 = vmatmul.f32.gmra.mxu0 %v131
    %v153 = vpop.f32.mrf.mxu0
    %v154 = vadd.f32 %v125, %v153
    %155 = vdwg.mxu0
    %vm156 = vcmask 785408
    %157 = vst.msk [vmem:[#allocation7] sm:$0xff] %vm156, %v151
    %158 = vst.msk [vmem:[#allocation7 + $0x8] sm:$0xff] %vm156, %v154
    // Predicated region
    $region30: #{tpu_custom_call.1} parent=1 // pred_check
      _
    $region31: #{tpu_custom_call.1} parent=1 // pred_check_branch
      %160 = sbr.rel (0) target = $region33
    $region32: #{tpu_custom_call.1} parent=1 // pred_region
      %162 = vsyncadd [#allocation4], 0
      %s163 = sshll.u32 [#allocation7], 4
      %s164 = int_to_ptr.vmem [resolvable:$true] %s163
      %s165 = sshll.u32 %s5, 4
      %s166 = int_to_ptr.hbm [resolvable:$true] %s165
      %171 = dma.vmem_to_hbm [thread:$0]  %s164, 256, %s166, [#allocation4], 128, 128, 8
    $region33: #{tpu_custom_call.1} parent=1 // pred_fallthru
      _
    // Predicated region
    $region34: #{tpu_custom_call.1} parent=1 // pred_check
      _
    $region35: #{tpu_custom_call.1} parent=1 // pred_check_branch
      %173 = sbr.rel (0) target = $region37
    $region36: #{tpu_custom_call.1} parent=1 // pred_region
      %175 = dma.done [#allocation4], 256
    $region37: #{tpu_custom_call.1} parent=1 // pred_fallthru
      _
    %176 = vsyncpa [#allocation3], 1
    %177 = vsyncpa [#allocation6], 1
    %178 = vsyncpa [#allocation4], 1

</llo_original>
